<compile_context>
chip_gen: v7x
topology: tpu7x:2x2x1
jax: 0.10.0
libtpu: 0.0.40
codegen_flags: <defaults>
</compile_context>

<pallas_src>
import jax
import jax.numpy as jnp
from jax.experimental import pallas as pl
from jax.experimental.pallas import tpu as pltpu

_MIB = 1024 * 1024


def _make_attention_kernel(tb, k, k_pad):
    """Kernel over one block of TB batch elements (K padded to k_pad)."""

    def attention_kernel(vflat_ref, q_ref, wv_ref, bv_ref, wq_ref, bq_ref,
                         wlT_ref, out_ref):
        # vflat_ref: (TB*K_pad, Vd)  rows for TB batch elements (batch-major)
        # q_ref:     (TB, Qd)
        # wv_ref:    (Vd, H)         bv_ref: (1, H)
        # wq_ref:    (Qd, H)         bq_ref: (1, H)
        # wlT_ref:   (1, H)          (the (H, 1) final linear, transposed)
        # out_ref:   (TB, K_pad)     softmax weights, K on the lane axis
        h = wv_ref.shape[1]

        # v_proj = ReLU(v @ Wv + bv) for all TB*K_pad rows in one MXU matmul.
        vp = jnp.maximum(
            jnp.dot(vflat_ref[...], wv_ref[...],
                    preferred_element_type=jnp.float32)
            + bv_ref[...].astype(jnp.float32),
            0.0)                                              # (TB*K_pad, H) f32

        # q_proj = ReLU(q @ Wq + bq), once per block (not per element).
        qp = jnp.maximum(
            jnp.dot(q_ref[...], wq_ref[...],
                    preferred_element_type=jnp.float32)
            + bq_ref[...].astype(jnp.float32),
            0.0)                                              # (TB, H) f32

        # Fold the final (H,1) projection into the elementwise product:
        #   logits[b,k] = sum_h vp[b,k,h] * (qp[b,h] * wl[h])
        # (final bias bl is constant over k -> softmax no-op -> dropped).
        qps = qp * wlT_ref[...].astype(jnp.float32)           # (TB, H)
        vp3 = vp.reshape(tb, k_pad, h)                        # sublane-aligned split
        logits = jnp.sum(vp3 * qps[:, None, :], axis=-1)      # VPU mul + XLU reduce
        # TODO(synk): dropout is identity at inference; not applied in-kernel.

        if k_pad != k:
            lane = jax.lax.broadcasted_iota(jnp.int32, (tb, k_pad), 1)
            logits = jnp.where(lane < k, logits, jnp.float32(-1e30))

        # Softmax over K (lane axis), max-stabilized, exact normalization.
        m = jnp.max(logits, axis=-1, keepdims=True)
        e = jnp.exp(logits - m)
        s = jnp.sum(e, axis=-1, keepdims=True)
        out_ref[...] = (e / s).astype(out_ref.dtype)

    return attention_kernel


def _vmem_limit_bytes():
    """Generation-aware scoped-VMEM limit (~75% of physical, capped)."""
    phys = None
    try:
        info = pltpu.get_tpu_info()
        phys = getattr(info, "vmem_capacity_bytes", None)
    except Exception:
        phys = None
    if not phys:
        phys = 64 * _MIB          # conservative (v7x per-TC) fallback
    # v5e/v6e (128 MiB) -> ~96 MiB; v7x (64 MiB) -> 48 MiB.
    return int(min(phys * 3 // 4, 100 * _MIB))


def _pick_block_b(B, k_pad, vd, qd, h, dt_bytes, vmem_limit):
    """Largest batch block whose working set fits ~75% of the VMEM limit."""
    budget = int(vmem_limit * 0.75)
    weight_bytes = (vd * h + qd * h) * dt_bytes + 3 * h * 4

    def working_set(tb):
        v_in = 2 * tb * k_pad * vd * dt_bytes           # double-buffered v block
        q_in = 2 * tb * qd * dt_bytes                   # double-buffered q block
        out_b = 2 * tb * k_pad * 4                      # double-buffered output
        vp_f32 = tb * k_pad * h * 4                     # f32 v-projection intermediate
        misc = tb * h * 4 + 4 * tb * k_pad * 4          # qp, logits, exp, sums
        return v_in + q_in + out_b + 2 * weight_bytes + vp_f32 + misc

    cands = sorted({d for d in range(8, B + 1, 8) if B % d == 0} | {B})
    fitting = [c for c in cands if working_set(c) <= budget]
    if not fitting:
        return cands[0]                                 # smallest legal block
    tb = max(fitting)
    if tb == B and B >= 16:
        # Prefer >=2 grid blocks so the parallel axis can shard across 2 TCs (v7x).
        multi = [c for c in fitting if c < B]
        if multi:
            tb = max(multi)
    return tb


def new_attention(v, q, wv, bv, wq, bq, wl, bl=None, *,
                  block_b=None, compute_dtype=jnp.bfloat16):
    """v: (B, K, Vd), q: (B, Qd); weights stored (in, out). Returns (B, K, 1).

    `bl` (final-linear bias) is accepted for API parity but unused: it is a
    constant over the softmax axis, hence a mathematical no-op on the output.
    """
    B, K, Vd = v.shape
    Qd = q.shape[-1]
    H = wv.shape[1]
    assert wq.shape == (Qd, H) and wl.shape == (H, 1)

    cdt = jnp.dtype(compute_dtype)
    dt_bytes = cdt.itemsize

    # Pad K up to a multiple of 8 so (TB*K, H) -> (TB, K, H) never splits a
    # sublane tile; padded rows are masked to -inf in-kernel before softmax.
    K_pad = ((K + 7) // 8) * 8
    if K_pad != K:
        v = jnp.pad(v, ((0, 0), (0, K_pad - K), (0, 0)))

    vmem_limit = _vmem_limit_bytes()
    if block_b is None:
        block_b = _pick_block_b(B, K_pad, Vd, Qd, H, dt_bytes, vmem_limit)
    TB = block_b
    assert B % TB == 0 and (TB == B or TB % 8 == 0)
    nblk = B // TB

    v_flat = v.reshape(B * K_pad, Vd).astype(cdt)        # batch-major rows
    q_c = q.astype(cdt)
    wv_c = wv.astype(cdt)
    wq_c = wq.astype(cdt)
    bv2 = bv.reshape(1, H).astype(jnp.float32)
    bq2 = bq.reshape(1, H).astype(jnp.float32)
    wlT = wl.reshape(1, H).astype(jnp.float32)

    kernel = _make_attention_kernel(TB, K, K_pad)
    out_shape = jax.ShapeDtypeStruct((B, K_pad), jnp.float32)

    cost = pl.CostEstimate(
        flops=2 * B * K_pad * Vd * H + 2 * B * Qd * H + 2 * B * K_pad * H,
        transcendentals=B * K_pad,
        bytes_accessed=int(v_flat.size * dt_bytes + q_c.size * dt_bytes
                           + (Vd * H + Qd * H) * dt_bytes + 3 * H * 4
                           + B * K_pad * 4),
    )

    def _run(single_buffer_weights):
        def wspec(shape):
            idx = lambda b: (0,) * len(shape)
            if single_buffer_weights:
                # Grid-invariant weights: no pipelining needed -> single buffer.
                return pl.BlockSpec(shape, idx,
                                    pipeline_mode=pl.Buffered(buffer_count=1))
            return pl.BlockSpec(shape, idx)

        grid_spec = pltpu.PrefetchScalarGridSpec(
            num_scalar_prefetch=0,
            grid=(nblk,),
            in_specs=[
                pl.BlockSpec((TB * K_pad, Vd), lambda b: (b, 0)),   # v rows of block b
                pl.BlockSpec((TB, Qd),         lambda b: (b, 0)),   # q rows of block b
                wspec((Vd, H)),                                     # resident weights
                wspec((1, H)),
                wspec((Qd, H)),
                wspec((1, H)),
                wspec((1, H)),
            ],
            out_specs=pl.BlockSpec((TB, K_pad), lambda b: (b, 0)),  # lane-dense slab
        )
        return pl.pallas_call(
            kernel,
            out_shape=out_shape,
            grid_spec=grid_spec,
            compiler_params=pltpu.CompilerParams(
                dimension_semantics=("parallel",),
                vmem_limit_bytes=vmem_limit,
            ),
            cost_estimate=cost,
        )(v_flat, q_c, wv_c, bv2, wq_c, bq2, wlT)

    try:
        out2d = _run(single_buffer_weights=True)
    except Exception:
        # pipeline_mode=Buffered(1) unsupported on this jax version/backend.
        out2d = _run(single_buffer_weights=False)

    return out2d[:, :K].reshape(B, K, 1)


def weight_norm_fold(V, g):
    # weight_norm with dim=None: W = g * V / ||V||_F  (scalar g)
    return g * V / jnp.sqrt(jnp.sum(V * V))


def reference(v, q, wv, bv, wq, bq, wl, bl):
    vp = jnp.maximum(jnp.einsum("bkd,dh->bkh", v, wv) + bv, 0.0)
    qp = jnp.maximum(q @ wq + bq, 0.0)[:, None, :]
    joint = vp * qp
    logits = jnp.einsum("bkh,ho->bko", joint, wl) + bl
    return jax.nn.softmax(logits, axis=1)


if __name__ == "__main__":
    # small shapes consistent with forward: v [B, K, Vd], q [B, Qd]
    B, K, Vd, Qd = 2, 8, 32, 16
    H = Qd  # num_hid == q_dim (required by the original module's self.linear)

    key = jax.random.PRNGKey(0)
    kv, kq, k1, k2, k3, k4, k5, k6 = jax.random.split(key, 8)

    v = jax.random.normal(kv, (B, K, Vd), dtype=jnp.float32)
    q = jax.random.normal(kq, (B, Qd), dtype=jnp.float32)

    # deterministic parameter init; weight_norm(dim=None) folded into weights.
    # PyTorch Linear weight is (out, in); we build (in, out) directly.
    Vv = jax.random.normal(k1, (Vd, H), dtype=jnp.float32) * 0.1
    wv = weight_norm_fold(Vv, jnp.float32(1.3))
    bv = jax.random.normal(k2, (H,), dtype=jnp.float32) * 0.05

    Vq = jax.random.normal(k3, (Qd, H), dtype=jnp.float32) * 0.1
    wq = weight_norm_fold(Vq, jnp.float32(0.8))
    bq = jax.random.normal(k4, (H,), dtype=jnp.float32) * 0.05

    Vl = jax.random.normal(k5, (H, 1), dtype=jnp.float32) * 0.1
    wl = weight_norm_fold(Vl, jnp.float32(1.1))
    bl = jax.random.normal(k6, (1,), dtype=jnp.float32) * 0.05

    ref = reference(v, q, wv, bv, wq, bq, wl, bl)

    # f32 compute path (tight tolerance; exact normalization).
    out_f32 = jax.block_until_ready(
        new_attention(v, q, wv, bv, wq, bq, wl, bl,
                      compute_dtype=jnp.float32))
    assert out_f32.shape == (B, K, 1)
    assert jnp.allclose(out_f32, ref, atol=1e-3, rtol=1e-3), "f32 mismatch vs reference"
    assert jnp.allclose(jnp.sum(out_f32, axis=1), 1.0, atol=1e-3)

    # bf16 MXU-operand path (default; v5e/v6e/v7x recommendation), f32 accumulation.
    out_bf16 = jax.block_until_ready(
        new_attention(v, q, wv, bv, wq, bq, wl, bl,
                      compute_dtype=jnp.bfloat16))
    assert out_bf16.shape == (B, K, 1)
    assert jnp.allclose(out_bf16, ref, atol=1e-2, rtol=1e-2), "bf16 mismatch vs reference"
    assert jnp.allclose(jnp.sum(out_bf16, axis=1), 1.0, atol=1e-2)

    print("KERNEL_OK")
</pallas_src>

<mosaic_0001>
module attributes {stable_mosaic.version = 11 : i64} {
  func.func @attention_kernel(%arg0: i32, %arg1: memref<16x32xf32, #tpu.memory_space<vmem>>, %arg2: memref<2x16xf32, #tpu.memory_space<vmem>>, %arg3: memref<32x16xf32, #tpu.memory_space<vmem>>, %arg4: memref<1x16xf32, #tpu.memory_space<vmem>>, %arg5: memref<16x16xf32, #tpu.memory_space<vmem>>, %arg6: memref<1x16xf32, #tpu.memory_space<vmem>>, %arg7: memref<1x16xf32, #tpu.memory_space<vmem>>, %arg8: memref<2x8xf32, #tpu.memory_space<vmem>>) attributes {dimension_semantics = [#tpu.dimension_semantics<parallel>], iteration_bounds = array<i64: 1>, scalar_prefetch = 0 : i64, scratch_operands = 0 : i64, tpu.core_type = #tpu.core_type<tc>, window_params = [{transform_indices = @transform_0, window_bounds = array<i64: 16, 32>}, {transform_indices = @transform_1, window_bounds = array<i64: 2, 16>}, {pipeline_mode = #tpu.pipeline_mode<synchronous>, transform_indices = @transform_2, window_bounds = array<i64: 32, 16>}, {pipeline_mode = #tpu.pipeline_mode<synchronous>, transform_indices = @transform_3, window_bounds = array<i64: 1, 16>}, {pipeline_mode = #tpu.pipeline_mode<synchronous>, transform_indices = @transform_4, window_bounds = array<i64: 16, 16>}, {pipeline_mode = #tpu.pipeline_mode<synchronous>, transform_indices = @transform_5, window_bounds = array<i64: 1, 16>}, {pipeline_mode = #tpu.pipeline_mode<synchronous>, transform_indices = @transform_6, window_bounds = array<i64: 1, 16>}, {transform_indices = @transform_7, window_bounds = array<i64: 2, 8>}]} {
    %c0 = arith.constant 0 : index
    %c0_0 = arith.constant 0 : index
    %0 = vector.load %arg1[%c0, %c0_0] : memref<16x32xf32, #tpu.memory_space<vmem>>, vector<16x32xf32>
    %c0_1 = arith.constant 0 : index
    %c0_2 = arith.constant 0 : index
    %1 = vector.load %arg3[%c0_1, %c0_2] : memref<32x16xf32, #tpu.memory_space<vmem>>, vector<32x16xf32>
    %cst = arith.constant dense<0.000000e+00> : vector<16x16xf32>
    %2 = tpu.matmul %0, %1, %cst {dimension_numbers = #tpu.dot_dimension_numbers<[1], [0], [0], [1], [0, 0, 1, 1], [], []>} : vector<16x32xf32>, vector<32x16xf32>, vector<16x16xf32> -> vector<16x16xf32>
    %c0_3 = arith.constant 0 : index
    %c0_4 = arith.constant 0 : index
    %3 = vector.load %arg4[%c0_3, %c0_4] : memref<1x16xf32, #tpu.memory_space<vmem>>, vector<1x16xf32>
    %4 = vector.broadcast %3 : vector<1x16xf32> to vector<16x16xf32>
    %5 = arith.addf %2, %4 : vector<16x16xf32>
    %cst_5 = arith.constant 0.000000e+00 : f32
    %6 = vector.broadcast %cst_5 : f32 to vector<16x16xf32>
    %7 = arith.maximumf %5, %6 : vector<16x16xf32>
    %c0_6 = arith.constant 0 : index
    %c0_7 = arith.constant 0 : index
    %8 = vector.load %arg2[%c0_6, %c0_7] : memref<2x16xf32, #tpu.memory_space<vmem>>, vector<2x16xf32>
    %c0_8 = arith.constant 0 : index
    %c0_9 = arith.constant 0 : index
    %9 = vector.load %arg5[%c0_8, %c0_9] : memref<16x16xf32, #tpu.memory_space<vmem>>, vector<16x16xf32>
    %cst_10 = arith.constant dense<0.000000e+00> : vector<2x16xf32>
    %10 = tpu.matmul %8, %9, %cst_10 {dimension_numbers = #tpu.dot_dimension_numbers<[1], [0], [0], [1], [0, 0, 1, 1], [], []>} : vector<2x16xf32>, vector<16x16xf32>, vector<2x16xf32> -> vector<2x16xf32>
    %c0_11 = arith.constant 0 : index
    %c0_12 = arith.constant 0 : index
    %11 = vector.load %arg6[%c0_11, %c0_12] : memref<1x16xf32, #tpu.memory_space<vmem>>, vector<1x16xf32>
    %12 = vector.broadcast %11 : vector<1x16xf32> to vector<2x16xf32>
    %13 = arith.addf %10, %12 : vector<2x16xf32>
    %cst_13 = arith.constant 0.000000e+00 : f32
    %14 = vector.broadcast %cst_13 : f32 to vector<2x16xf32>
    %15 = arith.maximumf %13, %14 : vector<2x16xf32>
    %c0_14 = arith.constant 0 : index
    %c0_15 = arith.constant 0 : index
    %16 = vector.load %arg7[%c0_14, %c0_15] : memref<1x16xf32, #tpu.memory_space<vmem>>, vector<1x16xf32>
    %17 = vector.broadcast %16 : vector<1x16xf32> to vector<2x16xf32>
    %18 = arith.mulf %15, %17 : vector<2x16xf32>
    %19 = vector.shape_cast %7 : vector<16x16xf32> to vector<2x8x16xf32>
    %20 = vector.shape_cast %18 : vector<2x16xf32> to vector<2x1x16xf32>
    %21 = vector.broadcast %20 : vector<2x1x16xf32> to vector<2x8x16xf32>
    %22 = arith.mulf %19, %21 : vector<2x8x16xf32>
    %cst_16 = arith.constant dense<0.000000e+00> : vector<2x8xf32>
    %23 = vector.multi_reduction <add>, %22, %cst_16 [2] : vector<2x8x16xf32> to vector<2x8xf32>
    %cst_17 = arith.constant dense<0xFF800000> : vector<2xf32>
    %24 = vector.multi_reduction <maximumf>, %23, %cst_17 [1] : vector<2x8xf32> to vector<2xf32>
    %25 = vector.shape_cast %24 : vector<2xf32> to vector<2x1xf32>
    %26 = vector.broadcast %25 : vector<2x1xf32> to vector<2x8xf32>
    %27 = arith.subf %23, %26 : vector<2x8xf32>
    %28 = math.exp %27 : vector<2x8xf32>
    %cst_18 = arith.constant dense<0.000000e+00> : vector<2xf32>
    %29 = vector.multi_reduction <add>, %28, %cst_18 [1] : vector<2x8xf32> to vector<2xf32>
    %30 = vector.shape_cast %29 : vector<2xf32> to vector<2x1xf32>
    %31 = vector.broadcast %30 : vector<2x1xf32> to vector<2x8xf32>
    %32 = arith.divf %28, %31 : vector<2x8xf32>
    %c0_19 = arith.constant 0 : index
    %c0_20 = arith.constant 0 : index
    %33 = vector.load %arg8[%c0_19, %c0_20] : memref<2x8xf32, #tpu.memory_space<vmem>>, vector<2x8xf32>
    tpu.vector_store %arg8[%c0_19, %c0_20], %32 {strides = array<i32>} : memref<2x8xf32, #tpu.memory_space<vmem>>, vector<2x8xf32>,
    return
  }
  func.func @transform_0(%arg0: i32) -> (i32, i32) {
    %c0_i32 = arith.constant 0 : i32
    %c0_i32_0 = arith.constant 0 : i32
    return %arg0, %c0_i32 : i32, i32
  }
  func.func @transform_1(%arg0: i32) -> (i32, i32) {
    %c0_i32 = arith.constant 0 : i32
    %c0_i32_0 = arith.constant 0 : i32
    return %arg0, %c0_i32 : i32, i32
  }
  func.func @transform_2(%arg0: i32) -> (i32, i32) {
    %c0_i32 = arith.constant 0 : i32
    %c0_i32_0 = arith.constant 0 : i32
    %c0_i32_1 = arith.constant 0 : i32
    return %c0_i32, %c0_i32_0 : i32, i32
  }
  func.func @transform_3(%arg0: i32) -> (i32, i32) {
    %c0_i32 = arith.constant 0 : i32
    %c0_i32_0 = arith.constant 0 : i32
    %c0_i32_1 = arith.constant 0 : i32
    return %c0_i32, %c0_i32_0 : i32, i32
  }
  func.func @transform_4(%arg0: i32) -> (i32, i32) {
    %c0_i32 = arith.constant 0 : i32
    %c0_i32_0 = arith.constant 0 : i32
    %c0_i32_1 = arith.constant 0 : i32
    return %c0_i32, %c0_i32_0 : i32, i32
  }
  func.func @transform_5(%arg0: i32) -> (i32, i32) {
    %c0_i32 = arith.constant 0 : i32
    %c0_i32_0 = arith.constant 0 : i32
    %c0_i32_1 = arith.constant 0 : i32
    return %c0_i32, %c0_i32_0 : i32, i32
  }
  func.func @transform_6(%arg0: i32) -> (i32, i32) {
    %c0_i32 = arith.constant 0 : i32
    %c0_i32_0 = arith.constant 0 : i32
    %c0_i32_1 = arith.constant 0 : i32
    return %c0_i32, %c0_i32_0 : i32, i32
  }
  func.func @transform_7(%arg0: i32) -> (i32, i32) {
    %c0_i32 = arith.constant 0 : i32
    %c0_i32_0 = arith.constant 0 : i32
    return %arg0, %c0_i32 : i32, i32
  }
}

module attributes {stable_mosaic.version = 11 : i64} {
  func.func @attention_kernel(%arg0: i32, %arg1: memref<16x32xf32, #tpu.memory_space<vmem>>, %arg2: memref<2x16xf32, #tpu.memory_space<vmem>>, %arg3: memref<32x16xf32, #tpu.memory_space<vmem>>, %arg4: memref<1x16xf32, #tpu.memory_space<vmem>>, %arg5: memref<16x16xf32, #tpu.memory_space<vmem>>, %arg6: memref<1x16xf32, #tpu.memory_space<vmem>>, %arg7: memref<1x16xf32, #tpu.memory_space<vmem>>, %arg8: memref<2x8xf32, #tpu.memory_space<vmem>>) attributes {dimension_semantics = [#tpu.dimension_semantics<parallel>], iteration_bounds = array<i64: 1>, scalar_prefetch = 0 : i64, scratch_operands = 0 : i64, tpu.core_type = #tpu.core_type<tc>, window_params = [{transform_indices = @transform_0, window_bounds = array<i64: 16, 32>}, {transform_indices = @transform_1, window_bounds = array<i64: 2, 16>}, {pipeline_mode = #tpu.pipeline_mode<synchronous>, transform_indices = @transform_2, window_bounds = array<i64: 32, 16>}, {pipeline_mode = #tpu.pipeline_mode<synchronous>, transform_indices = @transform_3, window_bounds = array<i64: 1, 16>}, {pipeline_mode = #tpu.pipeline_mode<synchronous>, transform_indices = @transform_4, window_bounds = array<i64: 16, 16>}, {pipeline_mode = #tpu.pipeline_mode<synchronous>, transform_indices = @transform_5, window_bounds = array<i64: 1, 16>}, {pipeline_mode = #tpu.pipeline_mode<synchronous>, transform_indices = @transform_6, window_bounds = array<i64: 1, 16>}, {transform_indices = @transform_7, window_bounds = array<i64: 2, 8>}]} {
    %c0 = arith.constant 0 : index
    %c0_0 = arith.constant 0 : index
    %0 = vector.load %arg1[%c0, %c0_0] : memref<16x32xf32, #tpu.memory_space<vmem>>, vector<16x32xf32>
    %c0_1 = arith.constant 0 : index
    %c0_2 = arith.constant 0 : index
    %1 = vector.load %arg3[%c0_1, %c0_2] : memref<32x16xf32, #tpu.memory_space<vmem>>, vector<32x16xf32>
    %cst = arith.constant dense<0.000000e+00> : vector<16x16xf32>
    %2 = tpu.matmul %0, %1, %cst {dimension_numbers = #tpu.dot_dimension_numbers<[1], [0], [0], [1], [0, 0, 1, 1], [], []>} : vector<16x32xf32>, vector<32x16xf32>, vector<16x16xf32> -> vector<16x16xf32>
    %c0_3 = arith.constant 0 : index
    %c0_4 = arith.constant 0 : index
    %3 = vector.load %arg4[%c0_3, %c0_4] : memref<1x16xf32, #tpu.memory_space<vmem>>, vector<1x16xf32>
    %4 = vector.broadcast %3 : vector<1x16xf32> to vector<16x16xf32>
    %5 = arith.addf %2, %4 : vector<16x16xf32>
    %cst_5 = arith.constant 0.000000e+00 : f32
    %6 = vector.broadcast %cst_5 : f32 to vector<16x16xf32>
    %7 = arith.maximumf %5, %6 : vector<16x16xf32>
    %c0_6 = arith.constant 0 : index
    %c0_7 = arith.constant 0 : index
    %8 = vector.load %arg2[%c0_6, %c0_7] : memref<2x16xf32, #tpu.memory_space<vmem>>, vector<2x16xf32>
    %c0_8 = arith.constant 0 : index
    %c0_9 = arith.constant 0 : index
    %9 = vector.load %arg5[%c0_8, %c0_9] : memref<16x16xf32, #tpu.memory_space<vmem>>, vector<16x16xf32>
    %cst_10 = arith.constant dense<0.000000e+00> : vector<2x16xf32>
    %10 = tpu.matmul %8, %9, %cst_10 {dimension_numbers = #tpu.dot_dimension_numbers<[1], [0], [0], [1], [0, 0, 1, 1], [], []>} : vector<2x16xf32>, vector<16x16xf32>, vector<2x16xf32> -> vector<2x16xf32>
    %c0_11 = arith.constant 0 : index
    %c0_12 = arith.constant 0 : index
    %11 = vector.load %arg6[%c0_11, %c0_12] : memref<1x16xf32, #tpu.memory_space<vmem>>, vector<1x16xf32>
    %12 = vector.broadcast %11 : vector<1x16xf32> to vector<2x16xf32>
    %13 = arith.addf %10, %12 : vector<2x16xf32>
    %cst_13 = arith.constant 0.000000e+00 : f32
    %14 = vector.broadcast %cst_13 : f32 to vector<2x16xf32>
    %15 = arith.maximumf %13, %14 : vector<2x16xf32>
    %c0_14 = arith.constant 0 : index
    %c0_15 = arith.constant 0 : index
    %16 = vector.load %arg7[%c0_14, %c0_15] : memref<1x16xf32, #tpu.memory_space<vmem>>, vector<1x16xf32>
    %17 = vector.broadcast %16 : vector<1x16xf32> to vector<2x16xf32>
    %18 = arith.mulf %15, %17 : vector<2x16xf32>
    %19 = vector.shape_cast %7 : vector<16x16xf32> to vector<2x8x16xf32>
    %20 = vector.shape_cast %18 : vector<2x16xf32> to vector<2x1x16xf32>
    %21 = vector.broadcast %20 : vector<2x1x16xf32> to vector<2x8x16xf32>
    %22 = arith.mulf %19, %21 : vector<2x8x16xf32>
    %cst_16 = arith.constant dense<0.000000e+00> : vector<2x8xf32>
    %23 = vector.multi_reduction <add>, %22, %cst_16 [2] : vector<2x8x16xf32> to vector<2x8xf32>
    %cst_17 = arith.constant dense<0xFF800000> : vector<2xf32>
    %24 = vector.multi_reduction <maximumf>, %23, %cst_17 [1] : vector<2x8xf32> to vector<2xf32>
    %25 = vector.shape_cast %24 : vector<2xf32> to vector<2x1xf32>
    %26 = vector.broadcast %25 : vector<2x1xf32> to vector<2x8xf32>
    %27 = arith.subf %23, %26 : vector<2x8xf32>
    %28 = math.exp %27 : vector<2x8xf32>
    %cst_18 = arith.constant dense<0.000000e+00> : vector<2xf32>
    %29 = vector.multi_reduction <add>, %28, %cst_18 [1] : vector<2x8xf32> to vector<2xf32>
    %30 = vector.shape_cast %29 : vector<2xf32> to vector<2x1xf32>
    %31 = vector.broadcast %30 : vector<2x1xf32> to vector<2x8xf32>
    %32 = arith.divf %28, %31 : vector<2x8xf32>
    %c0_19 = arith.constant 0 : index
    %c0_20 = arith.constant 0 : index
    %33 = vector.load %arg8[%c0_19, %c0_20] : memref<2x8xf32, #tpu.memory_space<vmem>>, vector<2x8xf32>
    tpu.vector_store %arg8[%c0_19, %c0_20], %32 {strides = array<i32>} : memref<2x8xf32, #tpu.memory_space<vmem>>, vector<2x8xf32>,
    return
  }
  func.func @transform_0(%arg0: i32) -> (i32, i32) {
    %c0_i32 = arith.constant 0 : i32
    %c0_i32_0 = arith.constant 0 : i32
    return %arg0, %c0_i32 : i32, i32
  }
  func.func @transform_1(%arg0: i32) -> (i32, i32) {
    %c0_i32 = arith.constant 0 : i32
    %c0_i32_0 = arith.constant 0 : i32
    return %arg0, %c0_i32 : i32, i32
  }
  func.func @transform_2(%arg0: i32) -> (i32, i32) {
    %c0_i32 = arith.constant 0 : i32
    %c0_i32_0 = arith.constant 0 : i32
    %c0_i32_1 = arith.constant 0 : i32
    return %c0_i32, %c0_i32_0 : i32, i32
  }
  func.func @transform_3(%arg0: i32) -> (i32, i32) {
    %c0_i32 = arith.constant 0 : i32
    %c0_i32_0 = arith.constant 0 : i32
    %c0_i32_1 = arith.constant 0 : i32
    return %c0_i32, %c0_i32_0 : i32, i32
  }
  func.func @transform_4(%arg0: i32) -> (i32, i32) {
    %c0_i32 = arith.constant 0 : i32
    %c0_i32_0 = arith.constant 0 : i32
    %c0_i32_1 = arith.constant 0 : i32
    return %c0_i32, %c0_i32_0 : i32, i32
  }
  func.func @transform_5(%arg0: i32) -> (i32, i32) {
    %c0_i32 = arith.constant 0 : i32
    %c0_i32_0 = arith.constant 0 : i32
    %c0_i32_1 = arith.constant 0 : i32
    return %c0_i32, %c0_i32_0 : i32, i32
  }
  func.func @transform_6(%arg0: i32) -> (i32, i32) {
    %c0_i32 = arith.constant 0 : i32
    %c0_i32_0 = arith.constant 0 : i32
    %c0_i32_1 = arith.constant 0 : i32
    return %c0_i32, %c0_i32_0 : i32, i32
  }
  func.func @transform_7(%arg0: i32) -> (i32, i32) {
    %c0_i32 = arith.constant 0 : i32
    %c0_i32_0 = arith.constant 0 : i32
    return %arg0, %c0_i32 : i32, i32
  }
}

</mosaic_0001>

<llo_original>
// kernel: tpu_custom_call.1
$region0: #{tpu_custom_call.1}
  #allocation0 [shape = 'u32[]', space=smem, size = 0x4, offset = 0x4, fixed_abs, tag = 'smem constant byte address 0x4 - core index']
  #allocation1 [shape = 'u32[144,128]{1,0:T(1,128)}', space=vmem, size = 0x12000, scoped, tag = 'internal scratch']
  %s0 = inlined_call_operand.vmem [shape: f32[16,32], index: 0, kind: input, shape index: {}]
  %s1 = inlined_call_operand.vmem [shape: f32[2,16], index: 1, kind: input, shape index: {}]
  %s2 = inlined_call_operand.vmem [shape: f32[32,16], index: 2, kind: input, shape index: {}]
  %s3 = inlined_call_operand.vmem [shape: f32[1,16], index: 3, kind: input, shape index: {}]
  %s4 = inlined_call_operand.vmem [shape: f32[16,16], index: 4, kind: input, shape index: {}]
  %s5 = inlined_call_operand.vmem [shape: f32[1,16], index: 5, kind: input, shape index: {}]
  %s6 = inlined_call_operand.vmem [shape: f32[1,16], index: 6, kind: input, shape index: {}]
  %s7 = inlined_call_operand.hbm [shape: f32[2,8], index: 7, kind: output, shape index: {}]
  %s8 = sld [smem:[#allocation0]]
  $region38: #{tpu_custom_call.1} parent=0
    _
  %s10 = ssub.s32 1, %s8
  %s11 = scalar_select 0, %s10, %s8
  $region1: #{tpu_custom_call.1} parent=0
    #allocation2 [shape = 'u8[1024]{0}', space=vmem, size = 0x400, scoped, tag = 'output window, operand 0, single buffered']
    #allocation3 [shape = 's32[1]{0}', space=sflag, size = 0x4, scoped, tag = 'scoped memory for tpu_custom_call.1']
    %12 = vsyncpa [#allocation3], 0
    // Predicated region
    $region2: #{tpu_custom_call.1} parent=1 // pred_check
      _
    $region3: #{tpu_custom_call.1} parent=1 // pred_check_branch
      %14 = sbr.rel (0) target = $region5
    $region4: #{tpu_custom_call.1} parent=1 // pred_region
      _
    $region5: #{tpu_custom_call.1} parent=1 // pred_fallthru
      _
    // Predicated region
    $region6: #{tpu_custom_call.1} parent=1 // pred_check
      _
    $region7: #{tpu_custom_call.1} parent=1 // pred_check_branch
      %16 = sbr.rel (0) target = $region9
    $region8: #{tpu_custom_call.1} parent=1 // pred_region
      _
    $region9: #{tpu_custom_call.1} parent=1 // pred_fallthru
      _
    // Predicated region
    $region10: #{tpu_custom_call.1} parent=1 // pred_check
      _
    $region11: #{tpu_custom_call.1} parent=1 // pred_check_branch
      %18 = sbr.rel (0) target = $region13
    $region12: #{tpu_custom_call.1} parent=1 // pred_region
      _
    $region13: #{tpu_custom_call.1} parent=1 // pred_fallthru
      _
    // Predicated region
    $region14: #{tpu_custom_call.1} parent=1 // pred_check
      _
    $region15: #{tpu_custom_call.1} parent=1 // pred_check_branch
      %20 = sbr.rel (0) target = $region17
    $region16: #{tpu_custom_call.1} parent=1 // pred_region
      _
    $region17: #{tpu_custom_call.1} parent=1 // pred_fallthru
      _
    // Predicated region
    $region18: #{tpu_custom_call.1} parent=1 // pred_check
      _
    $region19: #{tpu_custom_call.1} parent=1 // pred_check_branch
      %22 = sbr.rel (0) target = $region21
    $region20: #{tpu_custom_call.1} parent=1 // pred_region
      _
    $region21: #{tpu_custom_call.1} parent=1 // pred_fallthru
      _
    // Predicated region
    $region22: #{tpu_custom_call.1} parent=1 // pred_check
      _
    $region23: #{tpu_custom_call.1} parent=1 // pred_check_branch
      %24 = sbr.rel (0) target = $region25
    $region24: #{tpu_custom_call.1} parent=1 // pred_region
      _
    $region25: #{tpu_custom_call.1} parent=1 // pred_fallthru
      _
    // Predicated region
    $region26: #{tpu_custom_call.1} parent=1 // pred_check
      _
    $region27: #{tpu_custom_call.1} parent=1 // pred_check_branch
      %26 = sbr.rel (0) target = $region29
    $region28: #{tpu_custom_call.1} parent=1 // pred_region
      _
    $region29: #{tpu_custom_call.1} parent=1 // pred_fallthru
      _
    %v27 = vld [vmem:[%s0] sm:$0xff]
    %v28 = vld [vmem:[%s0 + $0x8] sm:$0xff]
    %v29 = vld [vmem:[%s2] sm:$0xff]
    %v30 = vld [vmem:[%s2 + $0x8] sm:$0xff]
    %v31 = vld [vmem:[%s2 + $0x10] sm:$0xff]
    %v32 = vld [vmem:[%s2 + $0x18] sm:$0xff]
    %v33 = vld [vmem:[%s3] sm:$0x1]
    %v35 = vlaneseq
    %v36 = vshrl.u32 %v35, 7
    %v37 = vsub.s32 0, %v36
    %v38 = vrot.slane %v33, %v37
    %vm40 = vcmask 261120
    %v42 = vsel %vm40, %v27, 0
    %v45 = vsel %vm40, %v28, 0
    %47 = vmatprep.subr.mxu0 0.0
    %48 = vmatpush1.msra.mxu0 %v29
    %49 = vmatprep.subr.mxu0 0.0
    %50 = vmatpush1.msra.mxu0 %v30
    %51 = vmatprep.subr.mxu0 0.0
    %52 = vmatpush1.msra.mxu0 %v31
    %53 = vmatprep.subr.mxu0 0.0
    %54 = vmatpush1.msra.mxu0 %v32
    %55 = vmatprep.subr.mxu0 0.0
    %56 = vmatpush1.msra.mxu0 0.0
    %57 = vmatprep.subr.mxu0 0.0
    %58 = vmatpush1.msra.mxu0 0.0
    %59 = vmatprep.subr.mxu0 0.0
    %60 = vmatpush1.msra.mxu0 0.0
    %61 = vmatprep.subr.mxu0 0.0
    %62 = vmatpush1.msra.mxu0 0.0
    %63 = vmatprep.subr.mxu0 0.0
    %64 = vmatpush1.msra.mxu0 0.0
    %65 = vmatprep.subr.mxu0 0.0
    %66 = vmatpush1.msra.mxu0 0.0
    %67 = vmatprep.subr.mxu0 0.0
    %68 = vmatpush1.msra.mxu0 0.0
    %69 = vmatprep.subr.mxu0 0.0
    %70 = vmatpush1.msra.mxu0 0.0
    %71 = vmatprep.subr.mxu0 0.0
    %72 = vmatpush1.msra.mxu0 0.0
    %73 = vmatprep.subr.mxu0 0.0
    %74 = vmatpush1.msra.mxu0 0.0
    %75 = vmatprep.subr.mxu0 0.0
    %76 = vmatpush1.msra.mxu0 0.0
    %77 = vmatprep.subr.mxu0 0.0
    %78 = vmatpush1.msra.mxu0 0.0
    %79 = vmatprep.subr.mxu0 0.0
    %80 = vmatpush1.msra.mxu0 0.0
    %81 = vmatprep.subr.mxu0 0.0
    %82 = vmatpush1.msra.mxu0 0.0
    %83 = vmatprep.subr.mxu0 0.0
    %84 = vmatpush1.msra.mxu0 0.0
    %85 = vmatprep.subr.mxu0 0.0
    %86 = vmatpush1.msra.mxu0 0.0
    %87 = vmatprep.subr.mxu0 0.0
    %88 = vmatpush1.msra.mxu0 0.0
    %89 = vmatprep.subr.mxu0 0.0
    %90 = vmatpush1.msra.mxu0 0.0
    %91 = vmatprep.subr.mxu0 0.0
    %92 = vmatpush1.msra.mxu0 0.0
    %93 = vmatprep.subr.mxu0 0.0
    %94 = vmatpush1.msra.mxu0 0.0
    %95 = vmatprep.subr.mxu0 0.0
    %96 = vmatpush1.msra.mxu0 0.0
    %97 = vmatprep.subr.mxu0 0.0
    %98 = vmatpush1.msra.mxu0 0.0
    %99 = vmatprep.subr.mxu0 0.0
    %100 = vmatpush1.msra.mxu0 0.0
    %101 = vmatprep.subr.mxu0 0.0
    %102 = vmatpush1.msra.mxu0 0.0
    %103 = vmatprep.subr.mxu0 0.0
    %104 = vmatpush1.msra.mxu0 0.0
    %105 = vmatprep.subr.mxu0 0.0
    %106 = vmatpush1.msra.mxu0 0.0
    %107 = vmatprep.subr.mxu0 0.0
    %108 = vmatpush1.msra.mxu0 0.0
    %109 = vmatprep.subr.mxu0 0.0
    %110 = vmatpush1.msra.mxu0 0.0
    %111 = vmatprep.mubr.f32.mxu0 0.0
    %112 = vmatmul.mubr.f32.gmra.mrb[0].mxu0 %v42
    %v113 = vpop.f32.mrb[0].mxu0
    %v114 = vadd.f32 %v38, %v113
    %v115 = vpop.f32.mrb[0].mxu0
    %116 = vmatprep.mubr.f32.mxu0 0.0
    %117 = vmatmul.mubr.f32.gmra.mrb[0].mxu0 %v45
    %v118 = vpop.f32.mrb[0].mxu0
    %v119 = vadd.f32 %v38, %v118
    %v120 = vpop.f32.mrb[0].mxu0
    %121 = vdwg.mxu0
    %v122 = vmax.f32 %v114, 0.0
    %v123 = vmax.f32 %v119, 0.0
    %v124 = vld [vmem:[%s1] sm:$0x3]
    %v125 = vld [vmem:[%s4] sm:$0xff]
    %v126 = vld [vmem:[%s4 + $0x8] sm:$0xff]
    %v127 = vld [vmem:[%s5] sm:$0x1]
    %v129 = vlaneseq
    %v130 = vshrl.u32 %v129, 7
    %v131 = vsub.s32 0, %v130
    %v132 = vrot.slane %v127, %v131
    %vm134 = vcmask 130048
    %v136 = vsel %vm134, %v124, 0
    %138 = vmatprep.subr.mxu0 0.0
    %139 = vmatpush1.msra.mxu0 %v125
    %140 = vmatprep.subr.mxu0 0.0
    %141 = vmatpush1.msra.mxu0 %v126
    %142 = vmatprep.subr.mxu0 0.0
    %143 = vmatpush1.msra.mxu0 0.0
    %144 = vmatprep.subr.mxu0 0.0
    %145 = vmatpush1.msra.mxu0 0.0
    %146 = vmatprep.subr.mxu0 0.0
    %147 = vmatpush1.msra.mxu0 0.0
    %148 = vmatprep.subr.mxu0 0.0
    %149 = vmatpush1.msra.mxu0 0.0
    %150 = vmatprep.subr.mxu0 0.0
    %151 = vmatpush1.msra.mxu0 0.0
    %152 = vmatprep.subr.mxu0 0.0
    %153 = vmatpush1.msra.mxu0 0.0
    %154 = vmatprep.subr.mxu0 0.0
    %155 = vmatpush1.msra.mxu0 0.0
    %156 = vmatprep.subr.mxu0 0.0
    %157 = vmatpush1.msra.mxu0 0.0
    %158 = vmatprep.subr.mxu0 0.0
    %159 = vmatpush1.msra.mxu0 0.0
    %160 = vmatprep.subr.mxu0 0.0
    %161 = vmatpush1.msra.mxu0 0.0
    %162 = vmatprep.subr.mxu0 0.0
    %163 = vmatpush1.msra.mxu0 0.0
    %164 = vmatprep.subr.mxu0 0.0
    %165 = vmatpush1.msra.mxu0 0.0
    %166 = vmatprep.subr.mxu0 0.0
    %167 = vmatpush1.msra.mxu0 0.0
    %168 = vmatprep.subr.mxu0 0.0
    %169 = vmatpush1.msra.mxu0 0.0
    %170 = vmatprep.subr.mxu0 0.0
    %171 = vmatpush1.msra.mxu0 0.0
    %172 = vmatprep.subr.mxu0 0.0
    %173 = vmatpush1.msra.mxu0 0.0
    %174 = vmatprep.subr.mxu0 0.0
    %175 = vmatpush1.msra.mxu0 0.0
    %176 = vmatprep.subr.mxu0 0.0
    %177 = vmatpush1.msra.mxu0 0.0
    %178 = vmatprep.subr.mxu0 0.0
    %179 = vmatpush1.msra.mxu0 0.0
    %180 = vmatprep.subr.mxu0 0.0
    %181 = vmatpush1.msra.mxu0 0.0
    %182 = vmatprep.subr.mxu0 0.0
    %183 = vmatpush1.msra.mxu0 0.0
    %184 = vmatprep.subr.mxu0 0.0
    %185 = vmatpush1.msra.mxu0 0.0
    %186 = vmatprep.subr.mxu0 0.0
    %187 = vmatpush1.msra.mxu0 0.0
    %188 = vmatprep.subr.mxu0 0.0
    %189 = vmatpush1.msra.mxu0 0.0
    %190 = vmatprep.subr.mxu0 0.0
    %191 = vmatpush1.msra.mxu0 0.0
    %192 = vmatprep.subr.mxu0 0.0
    %193 = vmatpush1.msra.mxu0 0.0
    %194 = vmatprep.subr.mxu0 0.0
    %195 = vmatpush1.msra.mxu0 0.0
    %196 = vmatprep.subr.mxu0 0.0
    %197 = vmatpush1.msra.mxu0 0.0
    %198 = vmatprep.subr.mxu0 0.0
    %199 = vmatpush1.msra.mxu0 0.0
    %200 = vmatprep.subr.mxu0 0.0
    %201 = vmatpush1.msra.mxu0 0.0
    %202 = vmatprep.mubr.f32.mxu0 0.0
    %203 = vmatmul.mubr.f32.gmra.mrb[0].mxu0 %v136
    %v204 = vpop.f32.mrb[0].mxu0
    %v205 = vadd.f32 %v132, %v204
    %v206 = vpop.f32.mrb[0].mxu0
    %207 = vdwg.mxu0
    %v208 = vmax.f32 %v205, 0.0
    %v209 = vld [vmem:[%s6] sm:$0x1]
    %v211 = vlaneseq
    %v212 = vshrl.u32 %v211, 7
    %v213 = vsub.s32 0, %v212
    %v214 = vrot.slane %v209, %v213
    %v216 = vmul.f32 %v208, %v214
    %v219 = vunpack.c.l.s4 1966171168
    %v220 = vunpack.c.0.s8 %v219
    %v221 = vlaneseq
    %v222 = vshrl.u32 %v221, 7
    %v223 = vsub.s32 %v220, %v222
    %v224 = vrot.slane %v216, %v223
    %v225 = vcombine.high %v224, %v224
    %v227 = vunpack.c.l.s4 1966171168
    %v228 = vunpack.c.0.s8 %v227
    %v229 = vlaneseq
    %v230 = vshrl.u32 %v229, 7
    %v231 = vsub.s32 %v228, %v230
    %v232 = vrot.slane %v224, %v231
    %v234 = vunpack.c.l.s4 1966171168
    %v235 = vunpack.c.0.s8 %v234
    %v236 = vlaneseq
    %v237 = vshrl.u32 %v236, 7
    %v238 = vsub.s32 %v235, %v237
    %v239 = vrot.slane %v225, %v238
    %v240 = vlaneseq
    %v241 = vshrl.u32 %v240, 7
    %v242 = vsub.s32 0, %v241
    %v243 = vrot.slane %v232, %v242
    %v244 = vlaneseq
    %v245 = vshrl.u32 %v244, 7
    %v246 = vsub.s32 0, %v245
    %v247 = vrot.slane %v239, %v246
    %v250 = vmul.f32 %v122, %v243
    %v251 = vmul.f32 %v123, %v247
    %v252 = vsel %vm134, %v250, 0.0
    %253 = vadd.xlane.f32.xlu0 %v252
    %v254 = vpop.xlane.xlu0 %253
    %v255 = vsel %vm134, %v251, 0.0
    %256 = vadd.xlane.f32.xlu0 %v255
    %v257 = vpop.xlane.xlu0 %256
    %v260 = vlaneseq
    %v261 = vand.u32 %v260, 127
    %v262 = vlaneseq
    %v263 = vshrl.u32 %v262, 7
    %v264 = vsub.s32 %v261, %v263
    %v265 = vrot.slane %v254, %v264
    %v266 = vlaneseq
    %v267 = vshrl.u32 %v266, 7
    %v268 = vsub.s32 %v261, %v267
    %v269 = vrot.slane %v257, %v268
    %vm270 = vcmask 1041409
    %v271 = vsel %vm270, %v269, %v265
    %vm273 = vcmask 58368
    %v274 = vsel %vm273, %v271, -inf
    %275 = vmax.xlane.f32.xlu0 %v274
    %v276 = vpop.xlane.xlu0 %275
    %v278 = vlaneseq
    %v279 = vshrl.u32 %v278, 7
    %v280 = vsub.s32 0, %v279
    %v281 = vrot.slane %v276, %v280
    %v282 = vlaneseq
    %v283 = vshrl.u32 %v282, 7
    %v284 = vsub.s32 1, %v283
    %v285 = vrot.slane %v276, %v284
    %v288 = vsub.f32 %v254, %v281
    %v289 = vsub.f32 %v257, %v285
    %v290 = vmul.f32 %v288, 1.442695
    %v291 = vpow.pop %v290
    %v292 = vmul.f32 %v289, 1.442695
    %v293 = vpow.pop %v292
    %296 = vset.pattern.permute.xlu0 0
    %297 = vperm.xlu0 %296, %v291
    %v298 = vpop.permute.xlu0 %297
    %299 = vset.pattern.permute.xlu0 0
    %300 = vperm.xlu0 %299, %v293
    %v301 = vpop.permute.xlu0 %300
    %v302 = vlaneseq
    %v303 = vshrl.u32 %v302, 7
    %v304 = vsub.s32 %v261, %v303
    %v305 = vrot.slane %v298, %v304
    %v306 = vlaneseq
    %v307 = vshrl.u32 %v306, 7
    %v308 = vsub.s32 %v261, %v307
    %v309 = vrot.slane %v301, %v308
    %v310 = vsel %vm270, %v309, %v305
    %v312 = vsel %vm273, %v310, 0.0
    %313 = vadd.xlane.f32.xlu0 %v312
    %v314 = vpop.xlane.xlu0 %313
    %v316 = vlaneseq
    %v317 = vshrl.u32 %v316, 7
    %v318 = vsub.s32 0, %v317
    %v319 = vrot.slane %v314, %v318
    %v320 = vlaneseq
    %v321 = vshrl.u32 %v320, 7
    %v322 = vsub.s32 1, %v321
    %v323 = vrot.slane %v314, %v322
    %v326 = vrcp.pop %v319
    %v327 = vmul.f32 %v291, %v326
    %v328 = vrcp.pop %v323
    %v329 = vmul.f32 %v293, %v328
    %332 = vset.pattern.permute.xlu0 0
    %333 = vperm.xlu0 %332, %v327
    %v334 = vpop.permute.xlu0 %333
    %335 = vset.pattern.permute.xlu0 0
    %336 = vperm.xlu0 %335, %v329
    %v337 = vpop.permute.xlu0 %336
    %v338 = vlaneseq
    %v339 = vshrl.u32 %v338, 7
    %v340 = vsub.s32 %v261, %v339
    %v341 = vrot.slane %v334, %v340
    %v342 = vlaneseq
    %v343 = vshrl.u32 %v342, 7
    %v344 = vsub.s32 %v261, %v343
    %v345 = vrot.slane %v337, %v344
    %v346 = vsel %vm270, %v345, %v341
    %348 = vst.msk [vmem:[#allocation2] sm:$0x3] %vm273, %v346
    // Predicated region
    $region30: #{tpu_custom_call.1} parent=1 // pred_check
      _
    $region31: #{tpu_custom_call.1} parent=1 // pred_check_branch
      %350 = sbr.rel (0) target = $region33
    $region32: #{tpu_custom_call.1} parent=1 // pred_region
      %s352 = ssub.s32 32, 32
      %353 = vsyncadd [#allocation3], %s352
      %s355 = sshll.u32 [#allocation2], 4
      %s356 = int_to_ptr.vmem [resolvable:$true] %s355
      %358 = dma.vmem_to_hbm [thread:$0]  %s356, 32, %s7, [#allocation3]
    $region33: #{tpu_custom_call.1} parent=1 // pred_fallthru
      _
    // Predicated region
    $region34: #{tpu_custom_call.1} parent=1 // pred_check
      _
    $region35: #{tpu_custom_call.1} parent=1 // pred_check_branch
      %360 = sbr.rel (0) target = $region37
    $region36: #{tpu_custom_call.1} parent=1 // pred_region
      %361 = dma.done [#allocation3], 32
    $region37: #{tpu_custom_call.1} parent=1 // pred_fallthru
      _
    %362 = vsyncpa [#allocation3], 1

// kernel: tpu_custom_call.1
$region0: #{tpu_custom_call.1}
  #allocation0 [shape = 'u32[]', space=smem, size = 0x4, offset = 0x4, fixed_abs, tag = 'smem constant byte address 0x4 - core index']
  #allocation1 [shape = 'u32[144,128]{1,0:T(1,128)}', space=vmem, size = 0x12000, scoped, tag = 'internal scratch']
  %s0 = inlined_call_operand.vmem [shape: f32[16,32], index: 0, kind: input, shape index: {}]
  %s1 = inlined_call_operand.vmem [shape: f32[2,16], index: 1, kind: input, shape index: {}]
  %s2 = inlined_call_operand.vmem [shape: f32[32,16], index: 2, kind: input, shape index: {}]
  %s3 = inlined_call_operand.vmem [shape: f32[1,16], index: 3, kind: input, shape index: {}]
  %s4 = inlined_call_operand.vmem [shape: f32[16,16], index: 4, kind: input, shape index: {}]
  %s5 = inlined_call_operand.vmem [shape: f32[1,16], index: 5, kind: input, shape index: {}]
  %s6 = inlined_call_operand.vmem [shape: f32[1,16], index: 6, kind: input, shape index: {}]
  %s7 = inlined_call_operand.hbm [shape: f32[2,8], index: 7, kind: output, shape index: {}]
  %s8 = sld [smem:[#allocation0]]
  $region38: #{tpu_custom_call.1} parent=0
    _
  %s10 = ssub.s32 1, %s8
  %s11 = scalar_select 0, %s10, %s8
  $region1: #{tpu_custom_call.1} parent=0
    #allocation2 [shape = 'u8[1024]{0}', space=vmem, size = 0x400, scoped, tag = 'output window, operand 0, single buffered']
    #allocation3 [shape = 's32[1]{0}', space=sflag, size = 0x4, scoped, tag = 'scoped memory for tpu_custom_call.1']
    %12 = vsyncpa [#allocation3], 0
    // Predicated region
    $region2: #{tpu_custom_call.1} parent=1 // pred_check
      _
    $region3: #{tpu_custom_call.1} parent=1 // pred_check_branch
      %14 = sbr.rel (0) target = $region5
    $region4: #{tpu_custom_call.1} parent=1 // pred_region
      _
    $region5: #{tpu_custom_call.1} parent=1 // pred_fallthru
      _
    // Predicated region
    $region6: #{tpu_custom_call.1} parent=1 // pred_check
      _
    $region7: #{tpu_custom_call.1} parent=1 // pred_check_branch
      %16 = sbr.rel (0) target = $region9
    $region8: #{tpu_custom_call.1} parent=1 // pred_region
      _
    $region9: #{tpu_custom_call.1} parent=1 // pred_fallthru
      _
    // Predicated region
    $region10: #{tpu_custom_call.1} parent=1 // pred_check
      _
    $region11: #{tpu_custom_call.1} parent=1 // pred_check_branch
      %18 = sbr.rel (0) target = $region13
    $region12: #{tpu_custom_call.1} parent=1 // pred_region
      _
    $region13: #{tpu_custom_call.1} parent=1 // pred_fallthru
      _
    // Predicated region
    $region14: #{tpu_custom_call.1} parent=1 // pred_check
      _
    $region15: #{tpu_custom_call.1} parent=1 // pred_check_branch
      %20 = sbr.rel (0) target = $region17
    $region16: #{tpu_custom_call.1} parent=1 // pred_region
      _
    $region17: #{tpu_custom_call.1} parent=1 // pred_fallthru
      _
    // Predicated region
    $region18: #{tpu_custom_call.1} parent=1 // pred_check
      _
    $region19: #{tpu_custom_call.1} parent=1 // pred_check_branch
      %22 = sbr.rel (0) target = $region21
    $region20: #{tpu_custom_call.1} parent=1 // pred_region
      _
    $region21: #{tpu_custom_call.1} parent=1 // pred_fallthru
      _
    // Predicated region
    $region22: #{tpu_custom_call.1} parent=1 // pred_check
      _
    $region23: #{tpu_custom_call.1} parent=1 // pred_check_branch
      %24 = sbr.rel (0) target = $region25
    $region24: #{tpu_custom_call.1} parent=1 // pred_region
      _
    $region25: #{tpu_custom_call.1} parent=1 // pred_fallthru
      _
    // Predicated region
    $region26: #{tpu_custom_call.1} parent=1 // pred_check
      _
    $region27: #{tpu_custom_call.1} parent=1 // pred_check_branch
      %26 = sbr.rel (0) target = $region29
    $region28: #{tpu_custom_call.1} parent=1 // pred_region
      _
    $region29: #{tpu_custom_call.1} parent=1 // pred_fallthru
      _
    %v27 = vld [vmem:[%s0] sm:$0xff]
    %v28 = vld [vmem:[%s0 + $0x8] sm:$0xff]
    %v29 = vld [vmem:[%s2] sm:$0xff]
    %v30 = vld [vmem:[%s2 + $0x8] sm:$0xff]
    %v31 = vld [vmem:[%s2 + $0x10] sm:$0xff]
    %v32 = vld [vmem:[%s2 + $0x18] sm:$0xff]
    %v33 = vld [vmem:[%s3] sm:$0x1]
    %v35 = vlaneseq
    %v36 = vshrl.u32 %v35, 7
    %v37 = vsub.s32 0, %v36
    %v38 = vrot.slane %v33, %v37
    %vm40 = vcmask 261120
    %v42 = vsel %vm40, %v27, 0
    %v45 = vsel %vm40, %v28, 0
    %47 = vmatprep.subr.mxu0 0.0
    %48 = vmatpush1.msra.mxu0 %v29
    %49 = vmatprep.subr.mxu0 0.0
    %50 = vmatpush1.msra.mxu0 %v30
    %51 = vmatprep.subr.mxu0 0.0
    %52 = vmatpush1.msra.mxu0 %v31
    %53 = vmatprep.subr.mxu0 0.0
    %54 = vmatpush1.msra.mxu0 %v32
    %55 = vmatprep.subr.mxu0 0.0
    %56 = vmatpush1.msra.mxu0 0.0
    %57 = vmatprep.subr.mxu0 0.0
    %58 = vmatpush1.msra.mxu0 0.0
    %59 = vmatprep.subr.mxu0 0.0
    %60 = vmatpush1.msra.mxu0 0.0
    %61 = vmatprep.subr.mxu0 0.0
    %62 = vmatpush1.msra.mxu0 0.0
    %63 = vmatprep.subr.mxu0 0.0
    %64 = vmatpush1.msra.mxu0 0.0
    %65 = vmatprep.subr.mxu0 0.0
    %66 = vmatpush1.msra.mxu0 0.0
    %67 = vmatprep.subr.mxu0 0.0
    %68 = vmatpush1.msra.mxu0 0.0
    %69 = vmatprep.subr.mxu0 0.0
    %70 = vmatpush1.msra.mxu0 0.0
    %71 = vmatprep.subr.mxu0 0.0
    %72 = vmatpush1.msra.mxu0 0.0
    %73 = vmatprep.subr.mxu0 0.0
    %74 = vmatpush1.msra.mxu0 0.0
    %75 = vmatprep.subr.mxu0 0.0
    %76 = vmatpush1.msra.mxu0 0.0
    %77 = vmatprep.subr.mxu0 0.0
    %78 = vmatpush1.msra.mxu0 0.0
    %79 = vmatprep.subr.mxu0 0.0
    %80 = vmatpush1.msra.mxu0 0.0
    %81 = vmatprep.subr.mxu0 0.0
    %82 = vmatpush1.msra.mxu0 0.0
    %83 = vmatprep.subr.mxu0 0.0
    %84 = vmatpush1.msra.mxu0 0.0
    %85 = vmatprep.subr.mxu0 0.0
    %86 = vmatpush1.msra.mxu0 0.0
    %87 = vmatprep.subr.mxu0 0.0
    %88 = vmatpush1.msra.mxu0 0.0
    %89 = vmatprep.subr.mxu0 0.0
    %90 = vmatpush1.msra.mxu0 0.0
    %91 = vmatprep.subr.mxu0 0.0
    %92 = vmatpush1.msra.mxu0 0.0
    %93 = vmatprep.subr.mxu0 0.0
    %94 = vmatpush1.msra.mxu0 0.0
    %95 = vmatprep.subr.mxu0 0.0
    %96 = vmatpush1.msra.mxu0 0.0
    %97 = vmatprep.subr.mxu0 0.0
    %98 = vmatpush1.msra.mxu0 0.0
    %99 = vmatprep.subr.mxu0 0.0
    %100 = vmatpush1.msra.mxu0 0.0
    %101 = vmatprep.subr.mxu0 0.0
    %102 = vmatpush1.msra.mxu0 0.0
    %103 = vmatprep.subr.mxu0 0.0
    %104 = vmatpush1.msra.mxu0 0.0
    %105 = vmatprep.subr.mxu0 0.0
    %106 = vmatpush1.msra.mxu0 0.0
    %107 = vmatprep.subr.mxu0 0.0
    %108 = vmatpush1.msra.mxu0 0.0
    %109 = vmatprep.subr.mxu0 0.0
    %110 = vmatpush1.msra.mxu0 0.0
    %111 = vmatprep.mubr.f32.mxu0 0.0
    %112 = vmatmul.mubr.f32.gmra.mrb[0].mxu0 %v42
    %v113 = vpop.f32.mrb[0].mxu0
    %v114 = vadd.f32 %v38, %v113
    %v115 = vpop.f32.mrb[0].mxu0
    %116 = vmatprep.mubr.f32.mxu0 0.0
    %117 = vmatmul.mubr.f32.gmra.mrb[0].mxu0 %v45
    %v118 = vpop.f32.mrb[0].mxu0
    %v119 = vadd.f32 %v38, %v118
    %v120 = vpop.f32.mrb[0].mxu0
    %121 = vdwg.mxu0
    %v122 = vmax.f32 %v114, 0.0
    %v123 = vmax.f32 %v119, 0.0
    %v124 = vld [vmem:[%s1] sm:$0x3]
    %v125 = vld [vmem:[%s4] sm:$0xff]
    %v126 = vld [vmem:[%s4 + $0x8] sm:$0xff]
    %v127 = vld [vmem:[%s5] sm:$0x1]
    %v129 = vlaneseq
    %v130 = vshrl.u32 %v129, 7
    %v131 = vsub.s32 0, %v130
    %v132 = vrot.slane %v127, %v131
    %vm134 = vcmask 130048
    %v136 = vsel %vm134, %v124, 0
    %138 = vmatprep.subr.mxu0 0.0
    %139 = vmatpush1.msra.mxu0 %v125
    %140 = vmatprep.subr.mxu0 0.0
    %141 = vmatpush1.msra.mxu0 %v126
    %142 = vmatprep.subr.mxu0 0.0
    %143 = vmatpush1.msra.mxu0 0.0
    %144 = vmatprep.subr.mxu0 0.0
    %145 = vmatpush1.msra.mxu0 0.0
    %146 = vmatprep.subr.mxu0 0.0
    %147 = vmatpush1.msra.mxu0 0.0
    %148 = vmatprep.subr.mxu0 0.0
    %149 = vmatpush1.msra.mxu0 0.0
    %150 = vmatprep.subr.mxu0 0.0
    %151 = vmatpush1.msra.mxu0 0.0
    %152 = vmatprep.subr.mxu0 0.0
    %153 = vmatpush1.msra.mxu0 0.0
    %154 = vmatprep.subr.mxu0 0.0
    %155 = vmatpush1.msra.mxu0 0.0
    %156 = vmatprep.subr.mxu0 0.0
    %157 = vmatpush1.msra.mxu0 0.0
    %158 = vmatprep.subr.mxu0 0.0
    %159 = vmatpush1.msra.mxu0 0.0
    %160 = vmatprep.subr.mxu0 0.0
    %161 = vmatpush1.msra.mxu0 0.0
    %162 = vmatprep.subr.mxu0 0.0
    %163 = vmatpush1.msra.mxu0 0.0
    %164 = vmatprep.subr.mxu0 0.0
    %165 = vmatpush1.msra.mxu0 0.0
    %166 = vmatprep.subr.mxu0 0.0
    %167 = vmatpush1.msra.mxu0 0.0
    %168 = vmatprep.subr.mxu0 0.0
    %169 = vmatpush1.msra.mxu0 0.0
    %170 = vmatprep.subr.mxu0 0.0
    %171 = vmatpush1.msra.mxu0 0.0
    %172 = vmatprep.subr.mxu0 0.0
    %173 = vmatpush1.msra.mxu0 0.0
    %174 = vmatprep.subr.mxu0 0.0
    %175 = vmatpush1.msra.mxu0 0.0
    %176 = vmatprep.subr.mxu0 0.0
    %177 = vmatpush1.msra.mxu0 0.0
    %178 = vmatprep.subr.mxu0 0.0
    %179 = vmatpush1.msra.mxu0 0.0
    %180 = vmatprep.subr.mxu0 0.0
    %181 = vmatpush1.msra.mxu0 0.0
    %182 = vmatprep.subr.mxu0 0.0
    %183 = vmatpush1.msra.mxu0 0.0
    %184 = vmatprep.subr.mxu0 0.0
    %185 = vmatpush1.msra.mxu0 0.0
    %186 = vmatprep.subr.mxu0 0.0
    %187 = vmatpush1.msra.mxu0 0.0
    %188 = vmatprep.subr.mxu0 0.0
    %189 = vmatpush1.msra.mxu0 0.0
    %190 = vmatprep.subr.mxu0 0.0
    %191 = vmatpush1.msra.mxu0 0.0
    %192 = vmatprep.subr.mxu0 0.0
    %193 = vmatpush1.msra.mxu0 0.0
    %194 = vmatprep.subr.mxu0 0.0
    %195 = vmatpush1.msra.mxu0 0.0
    %196 = vmatprep.subr.mxu0 0.0
    %197 = vmatpush1.msra.mxu0 0.0
    %198 = vmatprep.subr.mxu0 0.0
    %199 = vmatpush1.msra.mxu0 0.0
    %200 = vmatprep.subr.mxu0 0.0
    %201 = vmatpush1.msra.mxu0 0.0
    %202 = vmatprep.mubr.f32.mxu0 0.0
    %203 = vmatmul.mubr.f32.gmra.mrb[0].mxu0 %v136
    %v204 = vpop.f32.mrb[0].mxu0
    %v205 = vadd.f32 %v132, %v204
    %v206 = vpop.f32.mrb[0].mxu0
    %207 = vdwg.mxu0
    %v208 = vmax.f32 %v205, 0.0
    %v209 = vld [vmem:[%s6] sm:$0x1]
    %v211 = vlaneseq
    %v212 = vshrl.u32 %v211, 7
    %v213 = vsub.s32 0, %v212
    %v214 = vrot.slane %v209, %v213
    %v216 = vmul.f32 %v208, %v214
    %v219 = vunpack.c.l.s4 1966171168
    %v220 = vunpack.c.0.s8 %v219
    %v221 = vlaneseq
    %v222 = vshrl.u32 %v221, 7
    %v223 = vsub.s32 %v220, %v222
    %v224 = vrot.slane %v216, %v223
    %v225 = vcombine.high %v224, %v224
    %v227 = vunpack.c.l.s4 1966171168
    %v228 = vunpack.c.0.s8 %v227
    %v229 = vlaneseq
    %v230 = vshrl.u32 %v229, 7
    %v231 = vsub.s32 %v228, %v230
    %v232 = vrot.slane %v224, %v231
    %v234 = vunpack.c.l.s4 1966171168
    %v235 = vunpack.c.0.s8 %v234
    %v236 = vlaneseq
    %v237 = vshrl.u32 %v236, 7
    %v238 = vsub.s32 %v235, %v237
    %v239 = vrot.slane %v225, %v238
    %v240 = vlaneseq
    %v241 = vshrl.u32 %v240, 7
    %v242 = vsub.s32 0, %v241
    %v243 = vrot.slane %v232, %v242
    %v244 = vlaneseq
    %v245 = vshrl.u32 %v244, 7
    %v246 = vsub.s32 0, %v245
    %v247 = vrot.slane %v239, %v246
    %v250 = vmul.f32 %v122, %v243
    %v251 = vmul.f32 %v123, %v247
    %v252 = vsel %vm134, %v250, 0.0
    %253 = vadd.xlane.f32.xlu0 %v252
    %v254 = vpop.xlane.xlu0 %253
    %v255 = vsel %vm134, %v251, 0.0
    %256 = vadd.xlane.f32.xlu0 %v255
    %v257 = vpop.xlane.xlu0 %256
    %v260 = vlaneseq
    %v261 = vand.u32 %v260, 127
    %v262 = vlaneseq
    %v263 = vshrl.u32 %v262, 7
    %v264 = vsub.s32 %v261, %v263
    %v265 = vrot.slane %v254, %v264
    %v266 = vlaneseq
    %v267 = vshrl.u32 %v266, 7
    %v268 = vsub.s32 %v261, %v267
    %v269 = vrot.slane %v257, %v268
    %vm270 = vcmask 1041409
    %v271 = vsel %vm270, %v269, %v265
    %vm273 = vcmask 58368
    %v274 = vsel %vm273, %v271, -inf
    %275 = vmax.xlane.f32.xlu0 %v274
    %v276 = vpop.xlane.xlu0 %275
    %v278 = vlaneseq
    %v279 = vshrl.u32 %v278, 7
    %v280 = vsub.s32 0, %v279
    %v281 = vrot.slane %v276, %v280
    %v282 = vlaneseq
    %v283 = vshrl.u32 %v282, 7
    %v284 = vsub.s32 1, %v283
    %v285 = vrot.slane %v276, %v284
    %v288 = vsub.f32 %v254, %v281
    %v289 = vsub.f32 %v257, %v285
    %v290 = vmul.f32 %v288, 1.442695
    %v291 = vpow.pop %v290
    %v292 = vmul.f32 %v289, 1.442695
    %v293 = vpow.pop %v292
    %296 = vset.pattern.permute.xlu0 0
    %297 = vperm.xlu0 %296, %v291
    %v298 = vpop.permute.xlu0 %297
    %299 = vset.pattern.permute.xlu0 0
    %300 = vperm.xlu0 %299, %v293
    %v301 = vpop.permute.xlu0 %300
    %v302 = vlaneseq
    %v303 = vshrl.u32 %v302, 7
    %v304 = vsub.s32 %v261, %v303
    %v305 = vrot.slane %v298, %v304
    %v306 = vlaneseq
    %v307 = vshrl.u32 %v306, 7
    %v308 = vsub.s32 %v261, %v307
    %v309 = vrot.slane %v301, %v308
    %v310 = vsel %vm270, %v309, %v305
    %v312 = vsel %vm273, %v310, 0.0
    %313 = vadd.xlane.f32.xlu0 %v312
    %v314 = vpop.xlane.xlu0 %313
    %v316 = vlaneseq
    %v317 = vshrl.u32 %v316, 7
    %v318 = vsub.s32 0, %v317
    %v319 = vrot.slane %v314, %v318
    %v320 = vlaneseq
    %v321 = vshrl.u32 %v320, 7
    %v322 = vsub.s32 1, %v321
    %v323 = vrot.slane %v314, %v322
    %v326 = vrcp.pop %v319
    %v327 = vmul.f32 %v291, %v326
    %v328 = vrcp.pop %v323
    %v329 = vmul.f32 %v293, %v328
    %332 = vset.pattern.permute.xlu0 0
    %333 = vperm.xlu0 %332, %v327
    %v334 = vpop.permute.xlu0 %333
    %335 = vset.pattern.permute.xlu0 0
    %336 = vperm.xlu0 %335, %v329
    %v337 = vpop.permute.xlu0 %336
    %v338 = vlaneseq
    %v339 = vshrl.u32 %v338, 7
    %v340 = vsub.s32 %v261, %v339
    %v341 = vrot.slane %v334, %v340
    %v342 = vlaneseq
    %v343 = vshrl.u32 %v342, 7
    %v344 = vsub.s32 %v261, %v343
    %v345 = vrot.slane %v337, %v344
    %v346 = vsel %vm270, %v345, %v341
    %348 = vst.msk [vmem:[#allocation2] sm:$0x3] %vm273, %v346
    // Predicated region
    $region30: #{tpu_custom_call.1} parent=1 // pred_check
      _
    $region31: #{tpu_custom_call.1} parent=1 // pred_check_branch
      %350 = sbr.rel (0) target = $region33
    $region32: #{tpu_custom_call.1} parent=1 // pred_region
      %s352 = ssub.s32 32, 32
      %353 = vsyncadd [#allocation3], %s352
      %s355 = sshll.u32 [#allocation2], 4
      %s356 = int_to_ptr.vmem [resolvable:$true] %s355
      %358 = dma.vmem_to_hbm [thread:$0]  %s356, 32, %s7, [#allocation3]
    $region33: #{tpu_custom_call.1} parent=1 // pred_fallthru
      _
    // Predicated region
    $region34: #{tpu_custom_call.1} parent=1 // pred_check
      _
    $region35: #{tpu_custom_call.1} parent=1 // pred_check_branch
      %360 = sbr.rel (0) target = $region37
    $region36: #{tpu_custom_call.1} parent=1 // pred_region
      %361 = dma.done [#allocation3], 32
    $region37: #{tpu_custom_call.1} parent=1 // pred_fallthru
      _
    %362 = vsyncpa [#allocation3], 1

</llo_original>
